<compile_context>
chip_gen: v7x
topology: tpu7x:2x2x1
jax: 0.10.0
libtpu: 0.0.40
codegen_flags: <defaults>
</compile_context>

<pallas_src>
import functools

import jax
import jax.numpy as jnp
from jax import lax
from jax.experimental import pallas as pl
from jax.experimental.pallas import tpu as pltpu


# ----------------------------------------------------------------------------- kernel
def _up_kernel(x_ref, out_ref, *, scale, compute_dtype, precision):
    # x_ref:   (TM, W)           flattened input rows (one row per (b, c, h))
    # out_ref: (TM, s*s*W)       row r holds [ upsampled row (i=0) | zeros (i>0) ]
    tm, w = x_ref.shape
    sw = scale * w
    x = x_ref[...].astype(compute_dtype)

    # 0/1 lane zero-insertion matrix E[w, scale*w] = 1, built on the VPU
    # (free slot, no HBM traffic, no resident VMEM buffer).
    src = lax.broadcasted_iota(jnp.int32, (w, sw), 0)
    dst = lax.broadcasted_iota(jnp.int32, (w, sw), 1)
    e = (dst == scale * src).astype(compute_dtype)

    # t[:, scale*w] = x[:, w], everything else 0.  Tiny matmul, hidden under
    # the HBM-write roofline.
    t = jnp.dot(x, e, preferred_element_type=jnp.float32, precision=precision)

    # i = 0 rows of the upsampled image: first s*W lanes.
    out_ref[:, :sw] = t.astype(out_ref.dtype)
    # i = 1..scale-1 rows are identically zero: remaining lanes.
    pad = (scale * scale - scale) * w
    if pad:
        out_ref[:, sw:] = jnp.zeros((tm, pad), out_ref.dtype)


# ----------------------------------------------------------------------------- glue
def _pick_block_rows(n_rows, w, scale, itemsize, budget_bytes=4 * 1024 * 1024):
    """Biggest row tile whose single (input + output) copy stays under budget."""
    per_row = (w + scale * scale * w) * itemsize
    tm = max(1, budget_bytes // per_row)
    if tm >= n_rows:
        return n_rows                       # full extent: always a legal block dim
    return max(8, (tm // 8) * 8)            # partial blocks must be multiples of 8


@functools.partial(jax.jit, static_argnums=1)
def up_forward(x, scale):
    """Equivalent of Up(scale).forward(x) for NCHW input."""
    B, C, H, W = x.shape
    if scale == 1:
        return x
    sH, sW = scale * H, scale * W
    R = B * C * H
    out_cols = scale * scale * W            # (i, w, j) folded into the lane axis

    if x.dtype == jnp.bfloat16:
        compute_dtype, precision = jnp.bfloat16, lax.Precision.DEFAULT
    else:
        compute_dtype, precision = jnp.float32, lax.Precision.HIGHEST

    x2 = x.reshape(R, W)                    # free reshape
    itemsize = jnp.dtype(x.dtype).itemsize
    tm = _pick_block_rows(R, W, scale, itemsize)
    grid = (pl.cdiv(R, tm),)

    kernel = functools.partial(_up_kernel, scale=scale,
                               compute_dtype=compute_dtype, precision=precision)
    out2 = pl.pallas_call(
        kernel,
        out_shape=jax.ShapeDtypeStruct((R, out_cols), x.dtype),
        grid=grid,
        in_specs=[pl.BlockSpec((tm, W), lambda r: (r, 0))],
        out_specs=pl.BlockSpec((tm, out_cols), lambda r: (r, 0)),
        compiler_params=pltpu.CompilerParams(
            dimension_semantics=("parallel",),
            vmem_limit_bytes=32 * 1024 * 1024),
        cost_estimate=pl.CostEstimate(
            flops=2 * R * W * sW,                         # tiny selection matmul
            transcendentals=0,
            bytes_accessed=R * W * itemsize + R * out_cols * itemsize),
    )(x2)
    # (R, s*s*W) is the flattened (B, C, H, s, W, s) output: reshape is free.
    return out2.reshape(B, C, sH, sW)


if __name__ == "__main__":
    key = jax.random.PRNGKey(0)
    B, C, H, W = 2, 4, 16, 16
    scale = 2
    x = jax.random.uniform(key, (B, C, H, W), dtype=jnp.float32)

    out = jax.block_until_ready(up_forward(x, scale))

    assert out.shape == (B, C, scale * H, scale * W)
    assert out.dtype == x.dtype
    # Reference: zero-insertion upsample (same as torch F.pad + reshape).
    ref = jnp.zeros((B, C, scale * H, scale * W), x.dtype).at[:, :, ::scale, ::scale].set(x)
    assert bool(jnp.allclose(out, ref, atol=1e-5, rtol=0.0)), float(jnp.max(jnp.abs(out - ref)))
    # Inserted positions must be exactly zero.
    zmask = jnp.ones_like(ref, dtype=bool).at[:, :, ::scale, ::scale].set(False)
    assert bool(jnp.all(jnp.where(zmask, out, 0.0) == 0.0))
    assert bool(jnp.all(jnp.isfinite(out)))
    print("KERNEL_OK")
</pallas_src>

<mosaic_0001>
module attributes {stable_mosaic.version = 11 : i64} {
  func.func @_up_kernel(%arg0: i32, %arg1: memref<128x16xf32, #tpu.memory_space<vmem>>, %arg2: memref<128x64xf32, #tpu.memory_space<vmem>>) attributes {dimension_semantics = [#tpu.dimension_semantics<parallel>], iteration_bounds = array<i64: 1>, scalar_prefetch = 0 : i64, scratch_operands = 0 : i64, tpu.core_type = #tpu.core_type<tc>, window_params = [{transform_indices = @transform_0, window_bounds = array<i64: 128, 16>}, {transform_indices = @transform_1, window_bounds = array<i64: 128, 64>}]} {
    %c0 = arith.constant 0 : index
    %c0_0 = arith.constant 0 : index
    %0 = vector.load %arg1[%c0, %c0_0] : memref<128x16xf32, #tpu.memory_space<vmem>>, vector<128x16xf32>
    %1 = tpu.iota {dimensions = array<i32: 0>} : vector<16x32xi32>
    %2 = tpu.iota {dimensions = array<i32: 1>} : vector<16x32xi32>
    %c2_i32 = arith.constant 2 : i32
    %3 = vector.broadcast %c2_i32 : i32 to vector<16x32xi32>
    %4 = arith.muli %3, %1 : vector<16x32xi32>
    %5 = arith.cmpi eq, %2, %4 : vector<16x32xi32>
    %6 = arith.extui %5 : vector<16x32xi1> to vector<16x32xi32>
    %7 = arith.sitofp %6 : vector<16x32xi32> to vector<16x32xf32>
    %cst = arith.constant dense<0.000000e+00> : vector<128x32xf32>
    %8 = tpu.matmul %0, %7, %cst {dimension_numbers = #tpu.dot_dimension_numbers<[1], [0], [0], [1], [0, 0, 1, 1], [], []>, precision = #tpu.contract_precision<fp32>} : vector<128x16xf32>, vector<16x32xf32>, vector<128x32xf32> -> vector<128x32xf32>
    %c0_1 = arith.constant 0 : index
    %c0_2 = arith.constant 0 : index
    %9 = vector.load %arg2[%c0_1, %c0_2] : memref<128x64xf32, #tpu.memory_space<vmem>>, vector<128x32xf32>
    tpu.vector_store %arg2[%c0_1, %c0_2], %8 {strides = array<i32>} : memref<128x64xf32, #tpu.memory_space<vmem>>, vector<128x32xf32>,
    %cst_3 = arith.constant 0.000000e+00 : f32
    %10 = vector.broadcast %cst_3 : f32 to vector<128x32xf32>
    %c0_4 = arith.constant 0 : index
    %c32 = arith.constant 32 : index
    %11 = vector.load %arg2[%c0_4, %c32] : memref<128x64xf32, #tpu.memory_space<vmem>>, vector<128x32xf32>
    tpu.vector_store %arg2[%c0_4, %c32], %10 {strides = array<i32>} : memref<128x64xf32, #tpu.memory_space<vmem>>, vector<128x32xf32>,
    return
  }
  func.func @transform_0(%arg0: i32) -> (i32, i32) {
    %c0_i32 = arith.constant 0 : i32
    %c0_i32_0 = arith.constant 0 : i32
    return %arg0, %c0_i32 : i32, i32
  }
  func.func @transform_1(%arg0: i32) -> (i32, i32) {
    %c0_i32 = arith.constant 0 : i32
    %c0_i32_0 = arith.constant 0 : i32
    return %arg0, %c0_i32 : i32, i32
  }
}

</mosaic_0001>

<llo_original>
// kernel: up_forward.1
$region0: #{up_forward.1}
  #allocation0 [shape = 'u32[]', space=smem, size = 0x4, offset = 0x4, fixed_abs, tag = 'smem constant byte address 0x4 - core index']
  #allocation1 [shape = 'u32[144,128]{1,0:T(1,128)}', space=vmem, size = 0x12000, scoped, tag = 'internal scratch']
  %s0 = inlined_call_operand.hbm [shape: f32[128,16], index: 0, kind: input, shape index: {}]
  %s1 = inlined_call_operand.vmem [shape: f32[128,64], index: 1, kind: output, shape index: {}]
  %s2 = sld [smem:[#allocation0]]
  $region18: #{up_forward.1} parent=0
    _
  %s4 = ssub.s32 1, %s2
  %s5 = scalar_select 0, %s4, %s2
  $region1: #{up_forward.1} parent=0
    #allocation2 [shape = 'u8[65536]{0}', space=vmem, size = 0x10000, scoped, tag = 'input window, operand 0, single buffered']
    #allocation3 [shape = 's32[1]{0}', space=sflag, size = 0x4, scoped, tag = 'scoped memory for up_forward.1']
    %6 = vsyncpa [#allocation3], 0
    // Predicated region
    $region2: #{up_forward.1} parent=1 // pred_check
      _
    $region3: #{up_forward.1} parent=1 // pred_check_branch
      %8 = sbr.rel (0) target = $region5
    $region4: #{up_forward.1} parent=1 // pred_region
      %s10 = ssub.s32 2048, 2048
      %11 = vsyncadd [#allocation3], %s10
      %s12 = sshll.u32 [#allocation2], 4
      %s13 = int_to_ptr.vmem [resolvable:$true] %s12
      %18 = dma.hbm_to_vmem [thread:$0]  %s0, 2048, %s13, [#allocation3], 128, 128, 8
    $region5: #{up_forward.1} parent=1 // pred_fallthru
      _
    // Predicated region
    $region6: #{up_forward.1} parent=1 // pred_check
      _
    $region7: #{up_forward.1} parent=1 // pred_check_branch
      %20 = sbr.rel (0) target = $region9
    $region8: #{up_forward.1} parent=1 // pred_region
      %21 = dma.done [#allocation3], 2048
    $region9: #{up_forward.1} parent=1 // pred_fallthru
      _
    %v22 = vld [vmem:[#allocation2] sm:$0xff]
    %v23 = vld [vmem:[#allocation2 + $0x8] sm:$0xff]
    %v24 = vld [vmem:[#allocation2 + $0x10] sm:$0xff]
    %v25 = vld [vmem:[#allocation2 + $0x18] sm:$0xff]
    %v26 = vld [vmem:[#allocation2 + $0x20] sm:$0xff]
    %v27 = vld [vmem:[#allocation2 + $0x28] sm:$0xff]
    %v28 = vld [vmem:[#allocation2 + $0x30] sm:$0xff]
    %v29 = vld [vmem:[#allocation2 + $0x38] sm:$0xff]
    %v30 = vld [vmem:[#allocation2 + $0x40] sm:$0xff]
    %v31 = vld [vmem:[#allocation2 + $0x48] sm:$0xff]
    %v32 = vld [vmem:[#allocation2 + $0x50] sm:$0xff]
    %v33 = vld [vmem:[#allocation2 + $0x58] sm:$0xff]
    %v34 = vld [vmem:[#allocation2 + $0x60] sm:$0xff]
    %v35 = vld [vmem:[#allocation2 + $0x68] sm:$0xff]
    %v36 = vld [vmem:[#allocation2 + $0x70] sm:$0xff]
    %v37 = vld [vmem:[#allocation2 + $0x78] sm:$0xff]
    %v38 = vlaneseq
    %v39 = vshrl.u32 %v38, 7
    %v40 = vadd.s32 %v39, 8
    %v41 = vlaneseq
    %v42 = vand.u32 %v41, 127
    %v43 = vmul.u32 %v39, 2
    %v44 = vmul.u32 %v40, 2
    %vm45 = vcmp.eq.s32.totalorder %v42, %v43
    %vm46 = vcmp.eq.s32.totalorder %v42, %v44
    %v47 = vsel %vm45, 1, 0
    %v48 = vsel %vm46, 1, 0
    %v49 = vcvt.s32.f32 %v47
    %v50 = vcvt.s32.f32 %v48
    %vm51 = vcmask 130048
    %v53 = vsel %vm51, %v22, 0
    %v56 = vsel %vm51, %v23, 0
    %v59 = vsel %vm51, %v24, 0
    %v62 = vsel %vm51, %v25, 0
    %v65 = vsel %vm51, %v26, 0
    %v68 = vsel %vm51, %v27, 0
    %v71 = vsel %vm51, %v28, 0
    %v74 = vsel %vm51, %v29, 0
    %v77 = vsel %vm51, %v30, 0
    %v80 = vsel %vm51, %v31, 0
    %v83 = vsel %vm51, %v32, 0
    %v86 = vsel %vm51, %v33, 0
    %v89 = vsel %vm51, %v34, 0
    %v92 = vsel %vm51, %v35, 0
    %v95 = vsel %vm51, %v36, 0
    %v98 = vsel %vm51, %v37, 0
    %100 = vmatprep.subr.mxu0 0.0
    %v101 = vand.u32 %v49, 4294901760
    %102 = vmatpush1.msra.mxu0 %v101
    %103 = vmatprep.subr.mxu0 0.0
    %v104 = vand.u32 %v50, 4294901760
    %105 = vmatpush1.msra.mxu0 %v104
    %106 = vmatprep.subr.mxu0 0.0
    %107 = vmatpush1.msra.mxu0 0.0
    %108 = vmatprep.subr.mxu0 0.0
    %109 = vmatpush1.msra.mxu0 0.0
    %110 = vmatprep.subr.mxu0 0.0
    %111 = vmatpush1.msra.mxu0 0.0
    %112 = vmatprep.subr.mxu0 0.0
    %113 = vmatpush1.msra.mxu0 0.0
    %114 = vmatprep.subr.mxu0 0.0
    %115 = vmatpush1.msra.mxu0 0.0
    %116 = vmatprep.subr.mxu0 0.0
    %117 = vmatpush1.msra.mxu0 0.0
    %118 = vmatprep.subr.mxu0 0.0
    %119 = vmatpush1.msra.mxu0 0.0
    %120 = vmatprep.subr.mxu0 0.0
    %121 = vmatpush1.msra.mxu0 0.0
    %122 = vmatprep.subr.mxu0 0.0
    %123 = vmatpush1.msra.mxu0 0.0
    %124 = vmatprep.subr.mxu0 0.0
    %125 = vmatpush1.msra.mxu0 0.0
    %126 = vmatprep.subr.mxu0 0.0
    %127 = vmatpush1.msra.mxu0 0.0
    %128 = vmatprep.subr.mxu0 0.0
    %129 = vmatpush1.msra.mxu0 0.0
    %130 = vmatprep.subr.mxu0 0.0
    %131 = vmatpush1.msra.mxu0 0.0
    %132 = vmatprep.subr.mxu0 0.0
    %133 = vmatpush1.msra.mxu0 0.0
    %134 = vmatprep.subr.mxu0 0.0
    %135 = vmatpush1.msra.mxu0 0.0
    %136 = vmatprep.subr.mxu0 0.0
    %137 = vmatpush1.msra.mxu0 0.0
    %138 = vmatprep.subr.mxu0 0.0
    %139 = vmatpush1.msra.mxu0 0.0
    %140 = vmatprep.subr.mxu0 0.0
    %141 = vmatpush1.msra.mxu0 0.0
    %142 = vmatprep.subr.mxu0 0.0
    %143 = vmatpush1.msra.mxu0 0.0
    %144 = vmatprep.subr.mxu0 0.0
    %145 = vmatpush1.msra.mxu0 0.0
    %146 = vmatprep.subr.mxu0 0.0
    %147 = vmatpush1.msra.mxu0 0.0
    %148 = vmatprep.subr.mxu0 0.0
    %149 = vmatpush1.msra.mxu0 0.0
    %150 = vmatprep.subr.mxu0 0.0
    %151 = vmatpush1.msra.mxu0 0.0
    %152 = vmatprep.subr.mxu0 0.0
    %153 = vmatpush1.msra.mxu0 0.0
    %154 = vmatprep.subr.mxu0 0.0
    %155 = vmatpush1.msra.mxu0 0.0
    %156 = vmatprep.subr.mxu0 0.0
    %157 = vmatpush1.msra.mxu0 0.0
    %158 = vmatprep.subr.mxu0 0.0
    %159 = vmatpush1.msra.mxu0 0.0
    %160 = vmatprep.subr.mxu0 0.0
    %161 = vmatpush1.msra.mxu0 0.0
    %162 = vmatprep.subr.mxu0 0.0
    %163 = vmatpush1.msra.mxu0 0.0
    %164 = vmatprep.subr.mxu0 0.0
    %165 = vmatpush1.msra.mxu0 0.0
    %166 = vmatprep.mubr.f32.mxu0 0.0
    %v167 = vand.u32 %v53, 4294901760
    %v168 = vsub.f32 %v53, %v167
    %v169 = vand.u32 %v168, 4294901760
    %v170 = vsub.f32 %v168, %v169
    %v171 = vand.u32 %v170, 4294901760
    %172 = vmatmul.mubr.f32.gmra.mrb[0].mxu0 %v171
    %v173 = vpop.f32.mrb[0].mxu0
    %v174 = vadd.f32 0.0, %v173
    %v175 = vpop.f32.mrb[0].mxu0
    %176 = vmatprep.mubr.f32.mxu0 0.0
    %v177 = vand.u32 %v56, 4294901760
    %v178 = vsub.f32 %v56, %v177
    %v179 = vand.u32 %v178, 4294901760
    %v180 = vsub.f32 %v178, %v179
    %v181 = vand.u32 %v180, 4294901760
    %182 = vmatmul.mubr.f32.gmra.mrb[0].mxu0 %v181
    %v183 = vpop.f32.mrb[0].mxu0
    %v184 = vadd.f32 0.0, %v183
    %v185 = vpop.f32.mrb[0].mxu0
    %186 = vmatprep.mubr.f32.mxu0 0.0
    %v187 = vand.u32 %v59, 4294901760
    %v188 = vsub.f32 %v59, %v187
    %v189 = vand.u32 %v188, 4294901760
    %v190 = vsub.f32 %v188, %v189
    %v191 = vand.u32 %v190, 4294901760
    %192 = vmatmul.mubr.f32.gmra.mrb[0].mxu0 %v191
    %v193 = vpop.f32.mrb[0].mxu0
    %v194 = vadd.f32 0.0, %v193
    %v195 = vpop.f32.mrb[0].mxu0
    %196 = vmatprep.mubr.f32.mxu0 0.0
    %v197 = vand.u32 %v62, 4294901760
    %v198 = vsub.f32 %v62, %v197
    %v199 = vand.u32 %v198, 4294901760
    %v200 = vsub.f32 %v198, %v199
    %v201 = vand.u32 %v200, 4294901760
    %202 = vmatmul.mubr.f32.gmra.mrb[0].mxu0 %v201
    %v203 = vpop.f32.mrb[0].mxu0
    %v204 = vadd.f32 0.0, %v203
    %v205 = vpop.f32.mrb[0].mxu0
    %206 = vmatprep.mubr.f32.mxu0 0.0
    %v207 = vand.u32 %v65, 4294901760
    %v208 = vsub.f32 %v65, %v207
    %v209 = vand.u32 %v208, 4294901760
    %v210 = vsub.f32 %v208, %v209
    %v211 = vand.u32 %v210, 4294901760
    %212 = vmatmul.mubr.f32.gmra.mrb[0].mxu0 %v211
    %v213 = vpop.f32.mrb[0].mxu0
    %v214 = vadd.f32 0.0, %v213
    %v215 = vpop.f32.mrb[0].mxu0
    %216 = vmatprep.mubr.f32.mxu0 0.0
    %v217 = vand.u32 %v68, 4294901760
    %v218 = vsub.f32 %v68, %v217
    %v219 = vand.u32 %v218, 4294901760
    %v220 = vsub.f32 %v218, %v219
    %v221 = vand.u32 %v220, 4294901760
    %222 = vmatmul.mubr.f32.gmra.mrb[0].mxu0 %v221
    %v223 = vpop.f32.mrb[0].mxu0
    %v224 = vadd.f32 0.0, %v223
    %v225 = vpop.f32.mrb[0].mxu0
    %226 = vmatprep.mubr.f32.mxu0 0.0
    %v227 = vand.u32 %v71, 4294901760
    %v228 = vsub.f32 %v71, %v227
    %v229 = vand.u32 %v228, 4294901760
    %v230 = vsub.f32 %v228, %v229
    %v231 = vand.u32 %v230, 4294901760
    %232 = vmatmul.mubr.f32.gmra.mrb[0].mxu0 %v231
    %v233 = vpop.f32.mrb[0].mxu0
    %v234 = vadd.f32 0.0, %v233
    %v235 = vpop.f32.mrb[0].mxu0
    %236 = vmatprep.mubr.f32.mxu0 0.0
    %v237 = vand.u32 %v74, 4294901760
    %v238 = vsub.f32 %v74, %v237
    %v239 = vand.u32 %v238, 4294901760
    %v240 = vsub.f32 %v238, %v239
    %v241 = vand.u32 %v240, 4294901760
    %242 = vmatmul.mubr.f32.gmra.mrb[0].mxu0 %v241
    %v243 = vpop.f32.mrb[0].mxu0
    %v244 = vadd.f32 0.0, %v243
    %v245 = vpop.f32.mrb[0].mxu0
    %246 = vmatprep.mubr.f32.mxu0 0.0
    %v247 = vand.u32 %v77, 4294901760
    %v248 = vsub.f32 %v77, %v247
    %v249 = vand.u32 %v248, 4294901760
    %v250 = vsub.f32 %v248, %v249
    %v251 = vand.u32 %v250, 4294901760
    %252 = vmatmul.mubr.f32.gmra.mrb[0].mxu0 %v251
    %v253 = vpop.f32.mrb[0].mxu0
    %v254 = vadd.f32 0.0, %v253
    %v255 = vpop.f32.mrb[0].mxu0
    %256 = vmatprep.mubr.f32.mxu0 0.0
    %v257 = vand.u32 %v80, 4294901760
    %v258 = vsub.f32 %v80, %v257
    %v259 = vand.u32 %v258, 4294901760
    %v260 = vsub.f32 %v258, %v259
    %v261 = vand.u32 %v260, 4294901760
    %262 = vmatmul.mubr.f32.gmra.mrb[0].mxu0 %v261
    %v263 = vpop.f32.mrb[0].mxu0
    %v264 = vadd.f32 0.0, %v263
    %v265 = vpop.f32.mrb[0].mxu0
    %266 = vmatprep.mubr.f32.mxu0 0.0
    %v267 = vand.u32 %v83, 4294901760
    %v268 = vsub.f32 %v83, %v267
    %v269 = vand.u32 %v268, 4294901760
    %v270 = vsub.f32 %v268, %v269
    %v271 = vand.u32 %v270, 4294901760
    %272 = vmatmul.mubr.f32.gmra.mrb[0].mxu0 %v271
    %v273 = vpop.f32.mrb[0].mxu0
    %v274 = vadd.f32 0.0, %v273
    %v275 = vpop.f32.mrb[0].mxu0
    %276 = vmatprep.mubr.f32.mxu0 0.0
    %v277 = vand.u32 %v86, 4294901760
    %v278 = vsub.f32 %v86, %v277
    %v279 = vand.u32 %v278, 4294901760
    %v280 = vsub.f32 %v278, %v279
    %v281 = vand.u32 %v280, 4294901760
    %282 = vmatmul.mubr.f32.gmra.mrb[0].mxu0 %v281
    %v283 = vpop.f32.mrb[0].mxu0
    %v284 = vadd.f32 0.0, %v283
    %v285 = vpop.f32.mrb[0].mxu0
    %286 = vmatprep.mubr.f32.mxu0 0.0
    %v287 = vand.u32 %v89, 4294901760
    %v288 = vsub.f32 %v89, %v287
    %v289 = vand.u32 %v288, 4294901760
    %v290 = vsub.f32 %v288, %v289
    %v291 = vand.u32 %v290, 4294901760
    %292 = vmatmul.mubr.f32.gmra.mrb[0].mxu0 %v291
    %v293 = vpop.f32.mrb[0].mxu0
    %v294 = vadd.f32 0.0, %v293
    %v295 = vpop.f32.mrb[0].mxu0
    %296 = vmatprep.mubr.f32.mxu0 0.0
    %v297 = vand.u32 %v92, 4294901760
    %v298 = vsub.f32 %v92, %v297
    %v299 = vand.u32 %v298, 4294901760
    %v300 = vsub.f32 %v298, %v299
    %v301 = vand.u32 %v300, 4294901760
    %302 = vmatmul.mubr.f32.gmra.mrb[0].mxu0 %v301
    %v303 = vpop.f32.mrb[0].mxu0
    %v304 = vadd.f32 0.0, %v303
    %v305 = vpop.f32.mrb[0].mxu0
    %306 = vmatprep.mubr.f32.mxu0 0.0
    %v307 = vand.u32 %v95, 4294901760
    %v308 = vsub.f32 %v95, %v307
    %v309 = vand.u32 %v308, 4294901760
    %v310 = vsub.f32 %v308, %v309
    %v311 = vand.u32 %v310, 4294901760
    %312 = vmatmul.mubr.f32.gmra.mrb[0].mxu0 %v311
    %v313 = vpop.f32.mrb[0].mxu0
    %v314 = vadd.f32 0.0, %v313
    %v315 = vpop.f32.mrb[0].mxu0
    %316 = vmatprep.mubr.f32.mxu0 0.0
    %v317 = vand.u32 %v98, 4294901760
    %v318 = vsub.f32 %v98, %v317
    %v319 = vand.u32 %v318, 4294901760
    %v320 = vsub.f32 %v318, %v319
    %v321 = vand.u32 %v320, 4294901760
    %322 = vmatmul.mubr.f32.gmra.mrb[0].mxu0 %v321
    %v323 = vpop.f32.mrb[0].mxu0
    %v324 = vadd.f32 0.0, %v323
    %v325 = vpop.f32.mrb[0].mxu0
    %326 = vdwg.mxu0
    %327 = vmatprep.subr.mxu0 0.0
    %v328 = vand.u32 %v49, 4294901760
    %v329 = vsub.f32 %v49, %v328
    %v330 = vand.u32 %v329, 4294901760
    %v331 = vsub.f32 %v329, %v330
    %v332 = vand.u32 %v331, 4294901760
    %333 = vmatpush1.msra.mxu0 %v332
    %334 = vmatprep.subr.mxu0 0.0
    %v335 = vand.u32 %v50, 4294901760
    %v336 = vsub.f32 %v50, %v335
    %v337 = vand.u32 %v336, 4294901760
    %v338 = vsub.f32 %v336, %v337
    %v339 = vand.u32 %v338, 4294901760
    %340 = vmatpush1.msra.mxu0 %v339
    %341 = vmatprep.subr.mxu0 0.0
    %342 = vmatpush1.msra.mxu0 0.0
    %343 = vmatprep.subr.mxu0 0.0
    %344 = vmatpush1.msra.mxu0 0.0
    %345 = vmatprep.subr.mxu0 0.0
    %346 = vmatpush1.msra.mxu0 0.0
    %347 = vmatprep.subr.mxu0 0.0
    %348 = vmatpush1.msra.mxu0 0.0
    %349 = vmatprep.subr.mxu0 0.0
    %350 = vmatpush1.msra.mxu0 0.0
    %351 = vmatprep.subr.mxu0 0.0
    %352 = vmatpush1.msra.mxu0 0.0
    %353 = vmatprep.subr.mxu0 0.0
    %354 = vmatpush1.msra.mxu0 0.0
    %355 = vmatprep.subr.mxu0 0.0
    %356 = vmatpush1.msra.mxu0 0.0
    %357 = vmatprep.subr.mxu0 0.0
    %358 = vmatpush1.msra.mxu0 0.0
    %359 = vmatprep.subr.mxu0 0.0
    %360 = vmatpush1.msra.mxu0 0.0
    %361 = vmatprep.subr.mxu0 0.0
    %362 = vmatpush1.msra.mxu0 0.0
    %363 = vmatprep.subr.mxu0 0.0
    %364 = vmatpush1.msra.mxu0 0.0
    %365 = vmatprep.subr.mxu0 0.0
    %366 = vmatpush1.msra.mxu0 0.0
    %367 = vmatprep.subr.mxu0 0.0
    %368 = vmatpush1.msra.mxu0 0.0
    %369 = vmatprep.subr.mxu0 0.0
    %370 = vmatpush1.msra.mxu0 0.0
    %371 = vmatprep.subr.mxu0 0.0
    %372 = vmatpush1.msra.mxu0 0.0
    %373 = vmatprep.subr.mxu0 0.0
    %374 = vmatpush1.msra.mxu0 0.0
    %375 = vmatprep.subr.mxu0 0.0
    %376 = vmatpush1.msra.mxu0 0.0
    %377 = vmatprep.subr.mxu0 0.0
    %378 = vmatpush1.msra.mxu0 0.0
    %379 = vmatprep.subr.mxu0 0.0
    %380 = vmatpush1.msra.mxu0 0.0
    %381 = vmatprep.subr.mxu0 0.0
    %382 = vmatpush1.msra.mxu0 0.0
    %383 = vmatprep.subr.mxu0 0.0
    %384 = vmatpush1.msra.mxu0 0.0
    %385 = vmatprep.subr.mxu0 0.0
    %386 = vmatpush1.msra.mxu0 0.0
    %387 = vmatprep.subr.mxu0 0.0
    %388 = vmatpush1.msra.mxu0 0.0
    %389 = vmatprep.subr.mxu0 0.0
    %390 = vmatpush1.msra.mxu0 0.0
    %391 = vmatprep.subr.mxu0 0.0
    %392 = vmatpush1.msra.mxu0 0.0
    %393 = vmatprep.subr.mxu0 0.0
    %394 = vmatpush1.msra.mxu0 0.0
    %395 = vmatprep.subr.mxu0 0.0
    %396 = vmatpush1.msra.mxu0 0.0
    %397 = vmatprep.subr.mxu0 0.0
    %398 = vmatpush1.msra.mxu0 0.0
    %399 = vmatprep.subr.mxu0 0.0
    %400 = vmatpush1.msra.mxu0 0.0
    %401 = vmatprep.mubr.f32.mxu0 0.0
    %v402 = vand.u32 %v53, 4294901760
    %403 = vmatmul.mubr.f32.gmra.mrb[0].mxu0 %v402
    %v404 = vpop.f32.mrb[0].mxu0
    %v405 = vadd.f32 %v174, %v404
    %v406 = vpop.f32.mrb[0].mxu0
    %407 = vmatprep.mubr.f32.mxu0 0.0
    %v408 = vand.u32 %v56, 4294901760
    %409 = vmatmul.mubr.f32.gmra.mrb[0].mxu0 %v408
    %v410 = vpop.f32.mrb[0].mxu0
    %v411 = vadd.f32 %v184, %v410
    %v412 = vpop.f32.mrb[0].mxu0
    %413 = vmatprep.mubr.f32.mxu0 0.0
    %v414 = vand.u32 %v59, 4294901760
    %415 = vmatmul.mubr.f32.gmra.mrb[0].mxu0 %v414
    %v416 = vpop.f32.mrb[0].mxu0
    %v417 = vadd.f32 %v194, %v416
    %v418 = vpop.f32.mrb[0].mxu0
    %419 = vmatprep.mubr.f32.mxu0 0.0
    %v420 = vand.u32 %v62, 4294901760
    %421 = vmatmul.mubr.f32.gmra.mrb[0].mxu0 %v420
    %v422 = vpop.f32.mrb[0].mxu0
    %v423 = vadd.f32 %v204, %v422
    %v424 = vpop.f32.mrb[0].mxu0
    %425 = vmatprep.mubr.f32.mxu0 0.0
    %v426 = vand.u32 %v65, 4294901760
    %427 = vmatmul.mubr.f32.gmra.mrb[0].mxu0 %v426
    %v428 = vpop.f32.mrb[0].mxu0
    %v429 = vadd.f32 %v214, %v428
    %v430 = vpop.f32.mrb[0].mxu0
    %431 = vmatprep.mubr.f32.mxu0 0.0
    %v432 = vand.u32 %v68, 4294901760
    %433 = vmatmul.mubr.f32.gmra.mrb[0].mxu0 %v432
    %v434 = vpop.f32.mrb[0].mxu0
    %v435 = vadd.f32 %v224, %v434
    %v436 = vpop.f32.mrb[0].mxu0
    %437 = vmatprep.mubr.f32.mxu0 0.0
    %v438 = vand.u32 %v71, 4294901760
    %439 = vmatmul.mubr.f32.gmra.mrb[0].mxu0 %v438
    %v440 = vpop.f32.mrb[0].mxu0
    %v441 = vadd.f32 %v234, %v440
    %v442 = vpop.f32.mrb[0].mxu0
    %443 = vmatprep.mubr.f32.mxu0 0.0
    %v444 = vand.u32 %v74, 4294901760
    %445 = vmatmul.mubr.f32.gmra.mrb[0].mxu0 %v444
    %v446 = vpop.f32.mrb[0].mxu0
    %v447 = vadd.f32 %v244, %v446
    %v448 = vpop.f32.mrb[0].mxu0
    %449 = vmatprep.mubr.f32.mxu0 0.0
    %v450 = vand.u32 %v77, 4294901760
    %451 = vmatmul.mubr.f32.gmra.mrb[0].mxu0 %v450
    %v452 = vpop.f32.mrb[0].mxu0
    %v453 = vadd.f32 %v254, %v452
    %v454 = vpop.f32.mrb[0].mxu0
    %455 = vmatprep.mubr.f32.mxu0 0.0
    %v456 = vand.u32 %v80, 4294901760
    %457 = vmatmul.mubr.f32.gmra.mrb[0].mxu0 %v456
    %v458 = vpop.f32.mrb[0].mxu0
    %v459 = vadd.f32 %v264, %v458
    %v460 = vpop.f32.mrb[0].mxu0
    %461 = vmatprep.mubr.f32.mxu0 0.0
    %v462 = vand.u32 %v83, 4294901760
    %463 = vmatmul.mubr.f32.gmra.mrb[0].mxu0 %v462
    %v464 = vpop.f32.mrb[0].mxu0
    %v465 = vadd.f32 %v274, %v464
    %v466 = vpop.f32.mrb[0].mxu0
    %467 = vmatprep.mubr.f32.mxu0 0.0
    %v468 = vand.u32 %v86, 4294901760
    %469 = vmatmul.mubr.f32.gmra.mrb[0].mxu0 %v468
    %v470 = vpop.f32.mrb[0].mxu0
    %v471 = vadd.f32 %v284, %v470
    %v472 = vpop.f32.mrb[0].mxu0
    %473 = vmatprep.mubr.f32.mxu0 0.0
    %v474 = vand.u32 %v89, 4294901760
    %475 = vmatmul.mubr.f32.gmra.mrb[0].mxu0 %v474
    %v476 = vpop.f32.mrb[0].mxu0
    %v477 = vadd.f32 %v294, %v476
    %v478 = vpop.f32.mrb[0].mxu0
    %479 = vmatprep.mubr.f32.mxu0 0.0
    %v480 = vand.u32 %v92, 4294901760
    %481 = vmatmul.mubr.f32.gmra.mrb[0].mxu0 %v480
    %v482 = vpop.f32.mrb[0].mxu0
    %v483 = vadd.f32 %v304, %v482
    %v484 = vpop.f32.mrb[0].mxu0
    %485 = vmatprep.mubr.f32.mxu0 0.0
    %v486 = vand.u32 %v95, 4294901760
    %487 = vmatmul.mubr.f32.gmra.mrb[0].mxu0 %v486
    %v488 = vpop.f32.mrb[0].mxu0
    %v489 = vadd.f32 %v314, %v488
    %v490 = vpop.f32.mrb[0].mxu0
    %491 = vmatprep.mubr.f32.mxu0 0.0
    %v492 = vand.u32 %v98, 4294901760
    %493 = vmatmul.mubr.f32.gmra.mrb[0].mxu0 %v492
    %v494 = vpop.f32.mrb[0].mxu0
    %v495 = vadd.f32 %v324, %v494
    %v496 = vpop.f32.mrb[0].mxu0
    %497 = vdwg.mxu0
    %498 = vmatprep.subr.mxu0 0.0
    %v499 = vand.u32 %v49, 4294901760
    %v500 = vsub.f32 %v49, %v499
    %501 = vmatpush1.msra.mxu0 %v500
    %502 = vmatprep.subr.mxu0 0.0
    %v503 = vand.u32 %v50, 4294901760
    %v504 = vsub.f32 %v50, %v503
    %505 = vmatpush1.msra.mxu0 %v504
    %506 = vmatprep.subr.mxu0 0.0
    %507 = vmatpush1.msra.mxu0 0.0
    %508 = vmatprep.subr.mxu0 0.0
    %509 = vmatpush1.msra.mxu0 0.0
    %510 = vmatprep.subr.mxu0 0.0
    %511 = vmatpush1.msra.mxu0 0.0
    %512 = vmatprep.subr.mxu0 0.0
    %513 = vmatpush1.msra.mxu0 0.0
    %514 = vmatprep.subr.mxu0 0.0
    %515 = vmatpush1.msra.mxu0 0.0
    %516 = vmatprep.subr.mxu0 0.0
    %517 = vmatpush1.msra.mxu0 0.0
    %518 = vmatprep.subr.mxu0 0.0
    %519 = vmatpush1.msra.mxu0 0.0
    %520 = vmatprep.subr.mxu0 0.0
    %521 = vmatpush1.msra.mxu0 0.0
    %522 = vmatprep.subr.mxu0 0.0
    %523 = vmatpush1.msra.mxu0 0.0
    %524 = vmatprep.subr.mxu0 0.0
    %525 = vmatpush1.msra.mxu0 0.0
    %526 = vmatprep.subr.mxu0 0.0
    %527 = vmatpush1.msra.mxu0 0.0
    %528 = vmatprep.subr.mxu0 0.0
    %529 = vmatpush1.msra.mxu0 0.0
    %530 = vmatprep.subr.mxu0 0.0
    %531 = vmatpush1.msra.mxu0 0.0
    %532 = vmatprep.subr.mxu0 0.0
    %533 = vmatpush1.msra.mxu0 0.0
    %534 = vmatprep.subr.mxu0 0.0
    %535 = vmatpush1.msra.mxu0 0.0
    %536 = vmatprep.subr.mxu0 0.0
    %537 = vmatpush1.msra.mxu0 0.0
    %538 = vmatprep.subr.mxu0 0.0
    %539 = vmatpush1.msra.mxu0 0.0
    %540 = vmatprep.subr.mxu0 0.0
    %541 = vmatpush1.msra.mxu0 0.0
    %542 = vmatprep.subr.mxu0 0.0
    %543 = vmatpush1.msra.mxu0 0.0
    %544 = vmatprep.subr.mxu0 0.0
    %545 = vmatpush1.msra.mxu0 0.0
    %546 = vmatprep.subr.mxu0 0.0
    %547 = vmatpush1.msra.mxu0 0.0
    %548 = vmatprep.subr.mxu0 0.0
    %549 = vmatpush1.msra.mxu0 0.0
    %550 = vmatprep.subr.mxu0 0.0
    %551 = vmatpush1.msra.mxu0 0.0
    %552 = vmatprep.subr.mxu0 0.0
    %553 = vmatpush1.msra.mxu0 0.0
    %554 = vmatprep.subr.mxu0 0.0
    %555 = vmatpush1.msra.mxu0 0.0
    %556 = vmatprep.subr.mxu0 0.0
    %557 = vmatpush1.msra.mxu0 0.0
    %558 = vmatprep.subr.mxu0 0.0
    %559 = vmatpush1.msra.mxu0 0.0
    %560 = vmatprep.subr.mxu0 0.0
    %561 = vmatpush1.msra.mxu0 0.0
    %562 = vmatprep.subr.mxu0 0.0
    %563 = vmatpush1.msra.mxu0 0.0
    %564 = vmatprep.subr.mxu0 0.0
    %565 = vmatpush1.msra.mxu0 0.0
    %566 = vmatprep.mubr.f32.mxu0 0.0
    %v567 = vand.u32 %v53, 4294901760
    %v568 = vsub.f32 %v53, %v567
    %569 = vmatmul.mubr.f32.gmra.mrb[0].mxu0 %v568
    %v570 = vpop.f32.mrb[0].mxu0
    %v571 = vadd.f32 %v405, %v570
    %v572 = vpop.f32.mrb[0].mxu0
    %573 = vmatprep.mubr.f32.mxu0 0.0
    %v574 = vand.u32 %v56, 4294901760
    %v575 = vsub.f32 %v56, %v574
    %576 = vmatmul.mubr.f32.gmra.mrb[0].mxu0 %v575
    %v577 = vpop.f32.mrb[0].mxu0
    %v578 = vadd.f32 %v411, %v577
    %v579 = vpop.f32.mrb[0].mxu0
    %580 = vmatprep.mubr.f32.mxu0 0.0
    %v581 = vand.u32 %v59, 4294901760
    %v582 = vsub.f32 %v59, %v581
    %583 = vmatmul.mubr.f32.gmra.mrb[0].mxu0 %v582
    %v584 = vpop.f32.mrb[0].mxu0
    %v585 = vadd.f32 %v417, %v584
    %v586 = vpop.f32.mrb[0].mxu0
    %587 = vmatprep.mubr.f32.mxu0 0.0
    %v588 = vand.u32 %v62, 4294901760
    %v589 = vsub.f32 %v62, %v588
    %590 = vmatmul.mubr.f32.gmra.mrb[0].mxu0 %v589
    %v591 = vpop.f32.mrb[0].mxu0
    %v592 = vadd.f32 %v423, %v591
    %v593 = vpop.f32.mrb[0].mxu0
    %594 = vmatprep.mubr.f32.mxu0 0.0
    %v595 = vand.u32 %v65, 4294901760
    %v596 = vsub.f32 %v65, %v595
    %597 = vmatmul.mubr.f32.gmra.mrb[0].mxu0 %v596
    %v598 = vpop.f32.mrb[0].mxu0
    %v599 = vadd.f32 %v429, %v598
    %v600 = vpop.f32.mrb[0].mxu0
    %601 = vmatprep.mubr.f32.mxu0 0.0
    %v602 = vand.u32 %v68, 4294901760
    %v603 = vsub.f32 %v68, %v602
    %604 = vmatmul.mubr.f32.gmra.mrb[0].mxu0 %v603
    %v605 = vpop.f32.mrb[0].mxu0
    %v606 = vadd.f32 %v435, %v605
    %v607 = vpop.f32.mrb[0].mxu0
    %608 = vmatprep.mubr.f32.mxu0 0.0
    %v609 = vand.u32 %v71, 4294901760
    %v610 = vsub.f32 %v71, %v609
    %611 = vmatmul.mubr.f32.gmra.mrb[0].mxu0 %v610
    %v612 = vpop.f32.mrb[0].mxu0
    %v613 = vadd.f32 %v441, %v612
    %v614 = vpop.f32.mrb[0].mxu0
    %615 = vmatprep.mubr.f32.mxu0 0.0
    %v616 = vand.u32 %v74, 4294901760
    %v617 = vsub.f32 %v74, %v616
    %618 = vmatmul.mubr.f32.gmra.mrb[0].mxu0 %v617
    %v619 = vpop.f32.mrb[0].mxu0
    %v620 = vadd.f32 %v447, %v619
    %v621 = vpop.f32.mrb[0].mxu0
    %622 = vmatprep.mubr.f32.mxu0 0.0
    %v623 = vand.u32 %v77, 4294901760
    %v624 = vsub.f32 %v77, %v623
    %625 = vmatmul.mubr.f32.gmra.mrb[0].mxu0 %v624
    %v626 = vpop.f32.mrb[0].mxu0
    %v627 = vadd.f32 %v453, %v626
    %v628 = vpop.f32.mrb[0].mxu0
    %629 = vmatprep.mubr.f32.mxu0 0.0
    %v630 = vand.u32 %v80, 4294901760
    %v631 = vsub.f32 %v80, %v630
    %632 = vmatmul.mubr.f32.gmra.mrb[0].mxu0 %v631
    %v633 = vpop.f32.mrb[0].mxu0
    %v634 = vadd.f32 %v459, %v633
    %v635 = vpop.f32.mrb[0].mxu0
    %636 = vmatprep.mubr.f32.mxu0 0.0
    %v637 = vand.u32 %v83, 4294901760
    %v638 = vsub.f32 %v83, %v637
    %639 = vmatmul.mubr.f32.gmra.mrb[0].mxu0 %v638
    %v640 = vpop.f32.mrb[0].mxu0
    %v641 = vadd.f32 %v465, %v640
    %v642 = vpop.f32.mrb[0].mxu0
    %643 = vmatprep.mubr.f32.mxu0 0.0
    %v644 = vand.u32 %v86, 4294901760
    %v645 = vsub.f32 %v86, %v644
    %646 = vmatmul.mubr.f32.gmra.mrb[0].mxu0 %v645
    %v647 = vpop.f32.mrb[0].mxu0
    %v648 = vadd.f32 %v471, %v647
    %v649 = vpop.f32.mrb[0].mxu0
    %650 = vmatprep.mubr.f32.mxu0 0.0
    %v651 = vand.u32 %v89, 4294901760
    %v652 = vsub.f32 %v89, %v651
    %653 = vmatmul.mubr.f32.gmra.mrb[0].mxu0 %v652
    %v654 = vpop.f32.mrb[0].mxu0
    %v655 = vadd.f32 %v477, %v654
    %v656 = vpop.f32.mrb[0].mxu0
    %657 = vmatprep.mubr.f32.mxu0 0.0
    %v658 = vand.u32 %v92, 4294901760
    %v659 = vsub.f32 %v92, %v658
    %660 = vmatmul.mubr.f32.gmra.mrb[0].mxu0 %v659
    %v661 = vpop.f32.mrb[0].mxu0
    %v662 = vadd.f32 %v483, %v661
    %v663 = vpop.f32.mrb[0].mxu0
    %664 = vmatprep.mubr.f32.mxu0 0.0
    %v665 = vand.u32 %v95, 4294901760
    %v666 = vsub.f32 %v95, %v665
    %667 = vmatmul.mubr.f32.gmra.mrb[0].mxu0 %v666
    %v668 = vpop.f32.mrb[0].mxu0
    %v669 = vadd.f32 %v489, %v668
    %v670 = vpop.f32.mrb[0].mxu0
    %671 = vmatprep.mubr.f32.mxu0 0.0
    %v672 = vand.u32 %v98, 4294901760
    %v673 = vsub.f32 %v98, %v672
    %674 = vmatmul.mubr.f32.gmra.mrb[0].mxu0 %v673
    %v675 = vpop.f32.mrb[0].mxu0
    %v676 = vadd.f32 %v495, %v675
    %v677 = vpop.f32.mrb[0].mxu0
    %678 = vdwg.mxu0
    %679 = vmatprep.subr.mxu0 0.0
    %v680 = vand.u32 %v49, 4294901760
    %681 = vmatpush1.msra.mxu0 %v680
    %682 = vmatprep.subr.mxu0 0.0
    %v683 = vand.u32 %v50, 4294901760
    %684 = vmatpush1.msra.mxu0 %v683
    %685 = vmatprep.subr.mxu0 0.0
    %686 = vmatpush1.msra.mxu0 0.0
    %687 = vmatprep.subr.mxu0 0.0
    %688 = vmatpush1.msra.mxu0 0.0
    %689 = vmatprep.subr.mxu0 0.0
    %690 = vmatpush1.msra.mxu0 0.0
    %691 = vmatprep.subr.mxu0 0.0
    %692 = vmatpush1.msra.mxu0 0.0
    %693 = vmatprep.subr.mxu0 0.0
    %694 = vmatpush1.msra.mxu0 0.0
    %695 = vmatprep.subr.mxu0 0.0
    %696 = vmatpush1.msra.mxu0 0.0
    %697 = vmatprep.subr.mxu0 0.0
    %698 = vmatpush1.msra.mxu0 0.0
    %699 = vmatprep.subr.mxu0 0.0
    %700 = vmatpush1.msra.mxu0 0.0
    %701 = vmatprep.subr.mxu0 0.0
    %702 = vmatpush1.msra.mxu0 0.0
    %703 = vmatprep.subr.mxu0 0.0
    %704 = vmatpush1.msra.mxu0 0.0
    %705 = vmatprep.subr.mxu0 0.0
    %706 = vmatpush1.msra.mxu0 0.0
    %707 = vmatprep.subr.mxu0 0.0
    %708 = vmatpush1.msra.mxu0 0.0
    %709 = vmatprep.subr.mxu0 0.0
    %710 = vmatpush1.msra.mxu0 0.0
    %711 = vmatprep.subr.mxu0 0.0
    %712 = vmatpush1.msra.mxu0 0.0
    %713 = vmatprep.subr.mxu0 0.0
    %714 = vmatpush1.msra.mxu0 0.0
    %715 = vmatprep.subr.mxu0 0.0
    %716 = vmatpush1.msra.mxu0 0.0
    %717 = vmatprep.subr.mxu0 0.0
    %718 = vmatpush1.msra.mxu0 0.0
    %719 = vmatprep.subr.mxu0 0.0
    %720 = vmatpush1.msra.mxu0 0.0
    %721 = vmatprep.subr.mxu0 0.0
    %722 = vmatpush1.msra.mxu0 0.0
    %723 = vmatprep.subr.mxu0 0.0
    %724 = vmatpush1.msra.mxu0 0.0
    %725 = vmatprep.subr.mxu0 0.0
    %726 = vmatpush1.msra.mxu0 0.0
    %727 = vmatprep.subr.mxu0 0.0
    %728 = vmatpush1.msra.mxu0 0.0
    %729 = vmatprep.subr.mxu0 0.0
    %730 = vmatpush1.msra.mxu0 0.0
    %731 = vmatprep.subr.mxu0 0.0
    %732 = vmatpush1.msra.mxu0 0.0
    %733 = vmatprep.subr.mxu0 0.0
    %734 = vmatpush1.msra.mxu0 0.0
    %735 = vmatprep.subr.mxu0 0.0
    %736 = vmatpush1.msra.mxu0 0.0
    %737 = vmatprep.subr.mxu0 0.0
    %738 = vmatpush1.msra.mxu0 0.0
    %739 = vmatprep.subr.mxu0 0.0
    %740 = vmatpush1.msra.mxu0 0.0
    %741 = vmatprep.subr.mxu0 0.0
    %742 = vmatpush1.msra.mxu0 0.0
    %743 = vmatprep.subr.mxu0 0.0
    %744 = vmatpush1.msra.mxu0 0.0
    %745 = vmatprep.mubr.f32.mxu0 0.0
    %v746 = vand.u32 %v53, 4294901760
    %v747 = vsub.f32 %v53, %v746
    %v748 = vand.u32 %v747, 4294901760
    %749 = vmatmul.mubr.f32.gmra.mrb[0].mxu0 %v748
    %v750 = vpop.f32.mrb[0].mxu0
    %v751 = vadd.f32 %v571, %v750
    %v752 = vpop.f32.mrb[0].mxu0
    %753 = vmatprep.mubr.f32.mxu0 0.0
    %v754 = vand.u32 %v56, 4294901760
    %v755 = vsub.f32 %v56, %v754
    %v756 = vand.u32 %v755, 4294901760
    %757 = vmatmul.mubr.f32.gmra.mrb[0].mxu0 %v756
    %v758 = vpop.f32.mrb[0].mxu0
    %v759 = vadd.f32 %v578, %v758
    %v760 = vpop.f32.mrb[0].mxu0
    %761 = vmatprep.mubr.f32.mxu0 0.0
    %v762 = vand.u32 %v59, 4294901760
    %v763 = vsub.f32 %v59, %v762
    %v764 = vand.u32 %v763, 4294901760
    %765 = vmatmul.mubr.f32.gmra.mrb[0].mxu0 %v764
    %v766 = vpop.f32.mrb[0].mxu0
    %v767 = vadd.f32 %v585, %v766
    %v768 = vpop.f32.mrb[0].mxu0
    %769 = vmatprep.mubr.f32.mxu0 0.0
    %v770 = vand.u32 %v62, 4294901760
    %v771 = vsub.f32 %v62, %v770
    %v772 = vand.u32 %v771, 4294901760
    %773 = vmatmul.mubr.f32.gmra.mrb[0].mxu0 %v772
    %v774 = vpop.f32.mrb[0].mxu0
    %v775 = vadd.f32 %v592, %v774
    %v776 = vpop.f32.mrb[0].mxu0
    %777 = vmatprep.mubr.f32.mxu0 0.0
    %v778 = vand.u32 %v65, 4294901760
    %v779 = vsub.f32 %v65, %v778
    %v780 = vand.u32 %v779, 4294901760
    %781 = vmatmul.mubr.f32.gmra.mrb[0].mxu0 %v780
    %v782 = vpop.f32.mrb[0].mxu0
    %v783 = vadd.f32 %v599, %v782
    %v784 = vpop.f32.mrb[0].mxu0
    %785 = vmatprep.mubr.f32.mxu0 0.0
    %v786 = vand.u32 %v68, 4294901760
    %v787 = vsub.f32 %v68, %v786
    %v788 = vand.u32 %v787, 4294901760
    %789 = vmatmul.mubr.f32.gmra.mrb[0].mxu0 %v788
    %v790 = vpop.f32.mrb[0].mxu0
    %v791 = vadd.f32 %v606, %v790
    %v792 = vpop.f32.mrb[0].mxu0
    %793 = vmatprep.mubr.f32.mxu0 0.0
    %v794 = vand.u32 %v71, 4294901760
    %v795 = vsub.f32 %v71, %v794
    %v796 = vand.u32 %v795, 4294901760
    %797 = vmatmul.mubr.f32.gmra.mrb[0].mxu0 %v796
    %v798 = vpop.f32.mrb[0].mxu0
    %v799 = vadd.f32 %v613, %v798
    %v800 = vpop.f32.mrb[0].mxu0
    %801 = vmatprep.mubr.f32.mxu0 0.0
    %v802 = vand.u32 %v74, 4294901760
    %v803 = vsub.f32 %v74, %v802
    %v804 = vand.u32 %v803, 4294901760
    %805 = vmatmul.mubr.f32.gmra.mrb[0].mxu0 %v804
    %v806 = vpop.f32.mrb[0].mxu0
    %v807 = vadd.f32 %v620, %v806
    %v808 = vpop.f32.mrb[0].mxu0
    %809 = vmatprep.mubr.f32.mxu0 0.0
    %v810 = vand.u32 %v77, 4294901760
    %v811 = vsub.f32 %v77, %v810
    %v812 = vand.u32 %v811, 4294901760
    %813 = vmatmul.mubr.f32.gmra.mrb[0].mxu0 %v812
    %v814 = vpop.f32.mrb[0].mxu0
    %v815 = vadd.f32 %v627, %v814
    %v816 = vpop.f32.mrb[0].mxu0
    %817 = vmatprep.mubr.f32.mxu0 0.0
    %v818 = vand.u32 %v80, 4294901760
    %v819 = vsub.f32 %v80, %v818
    %v820 = vand.u32 %v819, 4294901760
    %821 = vmatmul.mubr.f32.gmra.mrb[0].mxu0 %v820
    %v822 = vpop.f32.mrb[0].mxu0
    %v823 = vadd.f32 %v634, %v822
    %v824 = vpop.f32.mrb[0].mxu0
    %825 = vmatprep.mubr.f32.mxu0 0.0
    %v826 = vand.u32 %v83, 4294901760
    %v827 = vsub.f32 %v83, %v826
    %v828 = vand.u32 %v827, 4294901760
    %829 = vmatmul.mubr.f32.gmra.mrb[0].mxu0 %v828
    %v830 = vpop.f32.mrb[0].mxu0
    %v831 = vadd.f32 %v641, %v830
    %v832 = vpop.f32.mrb[0].mxu0
    %833 = vmatprep.mubr.f32.mxu0 0.0
    %v834 = vand.u32 %v86, 4294901760
    %v835 = vsub.f32 %v86, %v834
    %v836 = vand.u32 %v835, 4294901760
    %837 = vmatmul.mubr.f32.gmra.mrb[0].mxu0 %v836
    %v838 = vpop.f32.mrb[0].mxu0
    %v839 = vadd.f32 %v648, %v838
    %v840 = vpop.f32.mrb[0].mxu0
    %841 = vmatprep.mubr.f32.mxu0 0.0
    %v842 = vand.u32 %v89, 4294901760
    %v843 = vsub.f32 %v89, %v842
    %v844 = vand.u32 %v843, 4294901760
    %845 = vmatmul.mubr.f32.gmra.mrb[0].mxu0 %v844
    %v846 = vpop.f32.mrb[0].mxu0
    %v847 = vadd.f32 %v655, %v846
    %v848 = vpop.f32.mrb[0].mxu0
    %849 = vmatprep.mubr.f32.mxu0 0.0
    %v850 = vand.u32 %v92, 4294901760
    %v851 = vsub.f32 %v92, %v850
    %v852 = vand.u32 %v851, 4294901760
    %853 = vmatmul.mubr.f32.gmra.mrb[0].mxu0 %v852
    %v854 = vpop.f32.mrb[0].mxu0
    %v855 = vadd.f32 %v662, %v854
    %v856 = vpop.f32.mrb[0].mxu0
    %857 = vmatprep.mubr.f32.mxu0 0.0
    %v858 = vand.u32 %v95, 4294901760
    %v859 = vsub.f32 %v95, %v858
    %v860 = vand.u32 %v859, 4294901760
    %861 = vmatmul.mubr.f32.gmra.mrb[0].mxu0 %v860
    %v862 = vpop.f32.mrb[0].mxu0
    %v863 = vadd.f32 %v669, %v862
    %v864 = vpop.f32.mrb[0].mxu0
    %865 = vmatprep.mubr.f32.mxu0 0.0
    %v866 = vand.u32 %v98, 4294901760
    %v867 = vsub.f32 %v98, %v866
    %v868 = vand.u32 %v867, 4294901760
    %869 = vmatmul.mubr.f32.gmra.mrb[0].mxu0 %v868
    %v870 = vpop.f32.mrb[0].mxu0
    %v871 = vadd.f32 %v676, %v870
    %v872 = vpop.f32.mrb[0].mxu0
    %873 = vdwg.mxu0
    %874 = vmatprep.subr.mxu0 0.0
    %v875 = vand.u32 %v49, 4294901760
    %v876 = vsub.f32 %v49, %v875
    %v877 = vand.u32 %v876, 4294901760
    %878 = vmatpush1.msra.mxu0 %v877
    %879 = vmatprep.subr.mxu0 0.0
    %v880 = vand.u32 %v50, 4294901760
    %v881 = vsub.f32 %v50, %v880
    %v882 = vand.u32 %v881, 4294901760
    %883 = vmatpush1.msra.mxu0 %v882
    %884 = vmatprep.subr.mxu0 0.0
    %885 = vmatpush1.msra.mxu0 0.0
    %886 = vmatprep.subr.mxu0 0.0
    %887 = vmatpush1.msra.mxu0 0.0
    %888 = vmatprep.subr.mxu0 0.0
    %889 = vmatpush1.msra.mxu0 0.0
    %890 = vmatprep.subr.mxu0 0.0
    %891 = vmatpush1.msra.mxu0 0.0
    %892 = vmatprep.subr.mxu0 0.0
    %893 = vmatpush1.msra.mxu0 0.0
    %894 = vmatprep.subr.mxu0 0.0
    %895 = vmatpush1.msra.mxu0 0.0
    %896 = vmatprep.subr.mxu0 0.0
    %897 = vmatpush1.msra.mxu0 0.0
    %898 = vmatprep.subr.mxu0 0.0
    %899 = vmatpush1.msra.mxu0 0.0
    %900 = vmatprep.subr.mxu0 0.0
    %901 = vmatpush1.msra.mxu0 0.0
    %902 = vmatprep.subr.mxu0 0.0
    %903 = vmatpush1.msra.mxu0 0.0
    %904 = vmatprep.subr.mxu0 0.0
    %905 = vmatpush1.msra.mxu0 0.0
    %906 = vmatprep.subr.mxu0 0.0
    %907 = vmatpush1.msra.mxu0 0.0
    %908 = vmatprep.subr.mxu0 0.0
    %909 = vmatpush1.msra.mxu0 0.0
    %910 = vmatprep.subr.mxu0 0.0
    %911 = vmatpush1.msra.mxu0 0.0
    %912 = vmatprep.subr.mxu0 0.0
    %913 = vmatpush1.msra.mxu0 0.0
    %914 = vmatprep.subr.mxu0 0.0
    %915 = vmatpush1.msra.mxu0 0.0
    %916 = vmatprep.subr.mxu0 0.0
    %917 = vmatpush1.msra.mxu0 0.0
    %918 = vmatprep.subr.mxu0 0.0
    %919 = vmatpush1.msra.mxu0 0.0
    %920 = vmatprep.subr.mxu0 0.0
    %921 = vmatpush1.msra.mxu0 0.0
    %922 = vmatprep.subr.mxu0 0.0
    %923 = vmatpush1.msra.mxu0 0.0
    %924 = vmatprep.subr.mxu0 0.0
    %925 = vmatpush1.msra.mxu0 0.0
    %926 = vmatprep.subr.mxu0 0.0
    %927 = vmatpush1.msra.mxu0 0.0
    %928 = vmatprep.subr.mxu0 0.0
    %929 = vmatpush1.msra.mxu0 0.0
    %930 = vmatprep.subr.mxu0 0.0
    %931 = vmatpush1.msra.mxu0 0.0
    %932 = vmatprep.subr.mxu0 0.0
    %933 = vmatpush1.msra.mxu0 0.0
    %934 = vmatprep.subr.mxu0 0.0
    %935 = vmatpush1.msra.mxu0 0.0
    %936 = vmatprep.subr.mxu0 0.0
    %937 = vmatpush1.msra.mxu0 0.0
    %938 = vmatprep.subr.mxu0 0.0
    %939 = vmatpush1.msra.mxu0 0.0
    %940 = vmatprep.subr.mxu0 0.0
    %941 = vmatpush1.msra.mxu0 0.0
    %942 = vmatprep.subr.mxu0 0.0
    %943 = vmatpush1.msra.mxu0 0.0
    %944 = vmatprep.mubr.f32.mxu0 0.0
    %v945 = vand.u32 %v53, 4294901760
    %946 = vmatmul.mubr.f32.gmra.mrb[0].mxu0 %v945
    %v947 = vpop.f32.mrb[0].mxu0
    %v948 = vadd.f32 %v751, %v947
    %v949 = vpop.f32.mrb[0].mxu0
    %950 = vmatprep.mubr.f32.mxu0 0.0
    %v951 = vand.u32 %v56, 4294901760
    %952 = vmatmul.mubr.f32.gmra.mrb[0].mxu0 %v951
    %v953 = vpop.f32.mrb[0].mxu0
    %v954 = vadd.f32 %v759, %v953
    %v955 = vpop.f32.mrb[0].mxu0
    %956 = vmatprep.mubr.f32.mxu0 0.0
    %v957 = vand.u32 %v59, 4294901760
    %958 = vmatmul.mubr.f32.gmra.mrb[0].mxu0 %v957
    %v959 = vpop.f32.mrb[0].mxu0
    %v960 = vadd.f32 %v767, %v959
    %v961 = vpop.f32.mrb[0].mxu0
    %962 = vmatprep.mubr.f32.mxu0 0.0
    %v963 = vand.u32 %v62, 4294901760
    %964 = vmatmul.mubr.f32.gmra.mrb[0].mxu0 %v963
    %v965 = vpop.f32.mrb[0].mxu0
    %v966 = vadd.f32 %v775, %v965
    %v967 = vpop.f32.mrb[0].mxu0
    %968 = vmatprep.mubr.f32.mxu0 0.0
    %v969 = vand.u32 %v65, 4294901760
    %970 = vmatmul.mubr.f32.gmra.mrb[0].mxu0 %v969
    %v971 = vpop.f32.mrb[0].mxu0
    %v972 = vadd.f32 %v783, %v971
    %v973 = vpop.f32.mrb[0].mxu0
    %974 = vmatprep.mubr.f32.mxu0 0.0
    %v975 = vand.u32 %v68, 4294901760
    %976 = vmatmul.mubr.f32.gmra.mrb[0].mxu0 %v975
    %v977 = vpop.f32.mrb[0].mxu0
    %v978 = vadd.f32 %v791, %v977
    %v979 = vpop.f32.mrb[0].mxu0
    %980 = vmatprep.mubr.f32.mxu0 0.0
    %v981 = vand.u32 %v71, 4294901760
    %982 = vmatmul.mubr.f32.gmra.mrb[0].mxu0 %v981
    %v983 = vpop.f32.mrb[0].mxu0
    %v984 = vadd.f32 %v799, %v983
    %v985 = vpop.f32.mrb[0].mxu0
    %986 = vmatprep.mubr.f32.mxu0 0.0
    %v987 = vand.u32 %v74, 4294901760
    %988 = vmatmul.mubr.f32.gmra.mrb[0].mxu0 %v987
    %v989 = vpop.f32.mrb[0].mxu0
    %v990 = vadd.f32 %v807, %v989
    %v991 = vpop.f32.mrb[0].mxu0
    %992 = vmatprep.mubr.f32.mxu0 0.0
    %v993 = vand.u32 %v77, 4294901760
    %994 = vmatmul.mubr.f32.gmra.mrb[0].mxu0 %v993
    %v995 = vpop.f32.mrb[0].mxu0
    %v996 = vadd.f32 %v815, %v995
    %v997 = vpop.f32.mrb[0].mxu0
    %998 = vmatprep.mubr.f32.mxu0 0.0
    %v999 = vand.u32 %v80, 4294901760
    %1000 = vmatmul.mubr.f32.gmra.mrb[0].mxu0 %v999
    %v1001 = vpop.f32.mrb[0].mxu0
    %v1002 = vadd.f32 %v823, %v1001
    %v1003 = vpop.f32.mrb[0].mxu0
    %1004 = vmatprep.mubr.f32.mxu0 0.0
    %v1005 = vand.u32 %v83, 4294901760
    %1006 = vmatmul.mubr.f32.gmra.mrb[0].mxu0 %v1005
    %v1007 = vpop.f32.mrb[0].mxu0
    %v1008 = vadd.f32 %v831, %v1007
    %v1009 = vpop.f32.mrb[0].mxu0
    %1010 = vmatprep.mubr.f32.mxu0 0.0
    %v1011 = vand.u32 %v86, 4294901760
    %1012 = vmatmul.mubr.f32.gmra.mrb[0].mxu0 %v1011
    %v1013 = vpop.f32.mrb[0].mxu0
    %v1014 = vadd.f32 %v839, %v1013
    %v1015 = vpop.f32.mrb[0].mxu0
    %1016 = vmatprep.mubr.f32.mxu0 0.0
    %v1017 = vand.u32 %v89, 4294901760
    %1018 = vmatmul.mubr.f32.gmra.mrb[0].mxu0 %v1017
    %v1019 = vpop.f32.mrb[0].mxu0
    %v1020 = vadd.f32 %v847, %v1019
    %v1021 = vpop.f32.mrb[0].mxu0
    %1022 = vmatprep.mubr.f32.mxu0 0.0
    %v1023 = vand.u32 %v92, 4294901760
    %1024 = vmatmul.mubr.f32.gmra.mrb[0].mxu0 %v1023
    %v1025 = vpop.f32.mrb[0].mxu0
    %v1026 = vadd.f32 %v855, %v1025
    %v1027 = vpop.f32.mrb[0].mxu0
    %1028 = vmatprep.mubr.f32.mxu0 0.0
    %v1029 = vand.u32 %v95, 4294901760
    %1030 = vmatmul.mubr.f32.gmra.mrb[0].mxu0 %v1029
    %v1031 = vpop.f32.mrb[0].mxu0
    %v1032 = vadd.f32 %v863, %v1031
    %v1033 = vpop.f32.mrb[0].mxu0
    %1034 = vmatprep.mubr.f32.mxu0 0.0
    %v1035 = vand.u32 %v98, 4294901760
    %1036 = vmatmul.mubr.f32.gmra.mrb[0].mxu0 %v1035
    %v1037 = vpop.f32.mrb[0].mxu0
    %v1038 = vadd.f32 %v871, %v1037
    %v1039 = vpop.f32.mrb[0].mxu0
    %1040 = vdwg.mxu0
    %1041 = vmatprep.subr.mxu0 0.0
    %v1042 = vand.u32 %v49, 4294901760
    %1043 = vmatpush1.msra.mxu0 %v1042
    %1044 = vmatprep.subr.mxu0 0.0
    %v1045 = vand.u32 %v50, 4294901760
    %1046 = vmatpush1.msra.mxu0 %v1045
    %1047 = vmatprep.subr.mxu0 0.0
    %1048 = vmatpush1.msra.mxu0 0.0
    %1049 = vmatprep.subr.mxu0 0.0
    %1050 = vmatpush1.msra.mxu0 0.0
    %1051 = vmatprep.subr.mxu0 0.0
    %1052 = vmatpush1.msra.mxu0 0.0
    %1053 = vmatprep.subr.mxu0 0.0
    %1054 = vmatpush1.msra.mxu0 0.0
    %1055 = vmatprep.subr.mxu0 0.0
    %1056 = vmatpush1.msra.mxu0 0.0
    %1057 = vmatprep.subr.mxu0 0.0
    %1058 = vmatpush1.msra.mxu0 0.0
    %1059 = vmatprep.subr.mxu0 0.0
    %1060 = vmatpush1.msra.mxu0 0.0
    %1061 = vmatprep.subr.mxu0 0.0
    %1062 = vmatpush1.msra.mxu0 0.0
    %1063 = vmatprep.subr.mxu0 0.0
    %1064 = vmatpush1.msra.mxu0 0.0
    %1065 = vmatprep.subr.mxu0 0.0
    %1066 = vmatpush1.msra.mxu0 0.0
    %1067 = vmatprep.subr.mxu0 0.0
    %1068 = vmatpush1.msra.mxu0 0.0
    %1069 = vmatprep.subr.mxu0 0.0
    %1070 = vmatpush1.msra.mxu0 0.0
    %1071 = vmatprep.subr.mxu0 0.0
    %1072 = vmatpush1.msra.mxu0 0.0
    %1073 = vmatprep.subr.mxu0 0.0
    %1074 = vmatpush1.msra.mxu0 0.0
    %1075 = vmatprep.subr.mxu0 0.0
    %1076 = vmatpush1.msra.mxu0 0.0
    %1077 = vmatprep.subr.mxu0 0.0
    %1078 = vmatpush1.msra.mxu0 0.0
    %1079 = vmatprep.subr.mxu0 0.0
    %1080 = vmatpush1.msra.mxu0 0.0
    %1081 = vmatprep.subr.mxu0 0.0
    %1082 = vmatpush1.msra.mxu0 0.0
    %1083 = vmatprep.subr.mxu0 0.0
    %1084 = vmatpush1.msra.mxu0 0.0
    %1085 = vmatprep.subr.mxu0 0.0
    %1086 = vmatpush1.msra.mxu0 0.0
    %1087 = vmatprep.subr.mxu0 0.0
    %1088 = vmatpush1.msra.mxu0 0.0
    %1089 = vmatprep.subr.mxu0 0.0
    %1090 = vmatpush1.msra.mxu0 0.0
    %1091 = vmatprep.subr.mxu0 0.0
    %1092 = vmatpush1.msra.mxu0 0.0
    %1093 = vmatprep.subr.mxu0 0.0
    %1094 = vmatpush1.msra.mxu0 0.0
    %1095 = vmatprep.subr.mxu0 0.0
    %1096 = vmatpush1.msra.mxu0 0.0
    %1097 = vmatprep.subr.mxu0 0.0
    %1098 = vmatpush1.msra.mxu0 0.0
    %1099 = vmatprep.subr.mxu0 0.0
    %1100 = vmatpush1.msra.mxu0 0.0
    %1101 = vmatprep.subr.mxu0 0.0
    %1102 = vmatpush1.msra.mxu0 0.0
    %1103 = vmatprep.subr.mxu0 0.0
    %1104 = vmatpush1.msra.mxu0 0.0
    %1105 = vmatprep.subr.mxu0 0.0
    %1106 = vmatpush1.msra.mxu0 0.0
    %1107 = vmatprep.mubr.f32.mxu0 0.0
    %v1108 = vand.u32 %v53, 4294901760
    %1109 = vmatmul.mubr.f32.gmra.mrb[0].mxu0 %v1108
    %v1110 = vpop.f32.mrb[0].mxu0
    %v1111 = vadd.f32 %v948, %v1110
    %v1112 = vpop.f32.mrb[0].mxu0
    %1113 = vmatprep.mubr.f32.mxu0 0.0
    %v1114 = vand.u32 %v56, 4294901760
    %1115 = vmatmul.mubr.f32.gmra.mrb[0].mxu0 %v1114
    %v1116 = vpop.f32.mrb[0].mxu0
    %v1117 = vadd.f32 %v954, %v1116
    %v1118 = vpop.f32.mrb[0].mxu0
    %1119 = vmatprep.mubr.f32.mxu0 0.0
    %v1120 = vand.u32 %v59, 4294901760
    %1121 = vmatmul.mubr.f32.gmra.mrb[0].mxu0 %v1120
    %v1122 = vpop.f32.mrb[0].mxu0
    %v1123 = vadd.f32 %v960, %v1122
    %v1124 = vpop.f32.mrb[0].mxu0
    %1125 = vmatprep.mubr.f32.mxu0 0.0
    %v1126 = vand.u32 %v62, 4294901760
    %1127 = vmatmul.mubr.f32.gmra.mrb[0].mxu0 %v1126
    %v1128 = vpop.f32.mrb[0].mxu0
    %v1129 = vadd.f32 %v966, %v1128
    %v1130 = vpop.f32.mrb[0].mxu0
    %1131 = vmatprep.mubr.f32.mxu0 0.0
    %v1132 = vand.u32 %v65, 4294901760
    %1133 = vmatmul.mubr.f32.gmra.mrb[0].mxu0 %v1132
    %v1134 = vpop.f32.mrb[0].mxu0
    %v1135 = vadd.f32 %v972, %v1134
    %v1136 = vpop.f32.mrb[0].mxu0
    %1137 = vmatprep.mubr.f32.mxu0 0.0
    %v1138 = vand.u32 %v68, 4294901760
    %1139 = vmatmul.mubr.f32.gmra.mrb[0].mxu0 %v1138
    %v1140 = vpop.f32.mrb[0].mxu0
    %v1141 = vadd.f32 %v978, %v1140
    %v1142 = vpop.f32.mrb[0].mxu0
    %1143 = vmatprep.mubr.f32.mxu0 0.0
    %v1144 = vand.u32 %v71, 4294901760
    %1145 = vmatmul.mubr.f32.gmra.mrb[0].mxu0 %v1144
    %v1146 = vpop.f32.mrb[0].mxu0
    %v1147 = vadd.f32 %v984, %v1146
    %v1148 = vpop.f32.mrb[0].mxu0
    %1149 = vmatprep.mubr.f32.mxu0 0.0
    %v1150 = vand.u32 %v74, 4294901760
    %1151 = vmatmul.mubr.f32.gmra.mrb[0].mxu0 %v1150
    %v1152 = vpop.f32.mrb[0].mxu0
    %v1153 = vadd.f32 %v990, %v1152
    %v1154 = vpop.f32.mrb[0].mxu0
    %1155 = vmatprep.mubr.f32.mxu0 0.0
    %v1156 = vand.u32 %v77, 4294901760
    %1157 = vmatmul.mubr.f32.gmra.mrb[0].mxu0 %v1156
    %v1158 = vpop.f32.mrb[0].mxu0
    %v1159 = vadd.f32 %v996, %v1158
    %v1160 = vpop.f32.mrb[0].mxu0
    %1161 = vmatprep.mubr.f32.mxu0 0.0
    %v1162 = vand.u32 %v80, 4294901760
    %1163 = vmatmul.mubr.f32.gmra.mrb[0].mxu0 %v1162
    %v1164 = vpop.f32.mrb[0].mxu0
    %v1165 = vadd.f32 %v1002, %v1164
    %v1166 = vpop.f32.mrb[0].mxu0
    %1167 = vmatprep.mubr.f32.mxu0 0.0
    %v1168 = vand.u32 %v83, 4294901760
    %1169 = vmatmul.mubr.f32.gmra.mrb[0].mxu0 %v1168
    %v1170 = vpop.f32.mrb[0].mxu0
    %v1171 = vadd.f32 %v1008, %v1170
    %v1172 = vpop.f32.mrb[0].mxu0
    %1173 = vmatprep.mubr.f32.mxu0 0.0
    %v1174 = vand.u32 %v86, 4294901760
    %1175 = vmatmul.mubr.f32.gmra.mrb[0].mxu0 %v1174
    %v1176 = vpop.f32.mrb[0].mxu0
    %v1177 = vadd.f32 %v1014, %v1176
    %v1178 = vpop.f32.mrb[0].mxu0
    %1179 = vmatprep.mubr.f32.mxu0 0.0
    %v1180 = vand.u32 %v89, 4294901760
    %1181 = vmatmul.mubr.f32.gmra.mrb[0].mxu0 %v1180
    %v1182 = vpop.f32.mrb[0].mxu0
    %v1183 = vadd.f32 %v1020, %v1182
    %v1184 = vpop.f32.mrb[0].mxu0
    %1185 = vmatprep.mubr.f32.mxu0 0.0
    %v1186 = vand.u32 %v92, 4294901760
    %1187 = vmatmul.mubr.f32.gmra.mrb[0].mxu0 %v1186
    %v1188 = vpop.f32.mrb[0].mxu0
    %v1189 = vadd.f32 %v1026, %v1188
    %v1190 = vpop.f32.mrb[0].mxu0
    %1191 = vmatprep.mubr.f32.mxu0 0.0
    %v1192 = vand.u32 %v95, 4294901760
    %1193 = vmatmul.mubr.f32.gmra.mrb[0].mxu0 %v1192
    %v1194 = vpop.f32.mrb[0].mxu0
    %v1195 = vadd.f32 %v1032, %v1194
    %v1196 = vpop.f32.mrb[0].mxu0
    %1197 = vmatprep.mubr.f32.mxu0 0.0
    %v1198 = vand.u32 %v98, 4294901760
    %1199 = vmatmul.mubr.f32.gmra.mrb[0].mxu0 %v1198
    %v1200 = vpop.f32.mrb[0].mxu0
    %v1201 = vadd.f32 %v1038, %v1200
    %v1202 = vpop.f32.mrb[0].mxu0
    %1203 = vdwg.mxu0
    %vm1204 = vcmask 261120
    %1205 = vst.msk [vmem:[%s1] sm:$0xff] %vm1204, %v1111
    %1206 = vst.msk [vmem:[%s1 + $0x8] sm:$0xff] %vm1204, %v1117
    %1207 = vst.msk [vmem:[%s1 + $0x10] sm:$0xff] %vm1204, %v1123
    %1208 = vst.msk [vmem:[%s1 + $0x18] sm:$0xff] %vm1204, %v1129
    %1209 = vst.msk [vmem:[%s1 + $0x20] sm:$0xff] %vm1204, %v1135
    %1210 = vst.msk [vmem:[%s1 + $0x28] sm:$0xff] %vm1204, %v1141
    %1211 = vst.msk [vmem:[%s1 + $0x30] sm:$0xff] %vm1204, %v1147
    %1212 = vst.msk [vmem:[%s1 + $0x38] sm:$0xff] %vm1204, %v1153
    %1213 = vst.msk [vmem:[%s1 + $0x40] sm:$0xff] %vm1204, %v1159
    %1214 = vst.msk [vmem:[%s1 + $0x48] sm:$0xff] %vm1204, %v1165
    %1215 = vst.msk [vmem:[%s1 + $0x50] sm:$0xff] %vm1204, %v1171
    %1216 = vst.msk [vmem:[%s1 + $0x58] sm:$0xff] %vm1204, %v1177
    %1217 = vst.msk [vmem:[%s1 + $0x60] sm:$0xff] %vm1204, %v1183
    %1218 = vst.msk [vmem:[%s1 + $0x68] sm:$0xff] %vm1204, %v1189
    %1219 = vst.msk [vmem:[%s1 + $0x70] sm:$0xff] %vm1204, %v1195
    %1220 = vst.msk [vmem:[%s1 + $0x78] sm:$0xff] %vm1204, %v1201
    %vm1221 = vcmask 523520
    %1222 = vst.msk [vmem:[%s1] sm:$0xff] %vm1221, 0.0
    %1223 = vst.msk [vmem:[%s1 + $0x8] sm:$0xff] %vm1221, 0.0
    %1224 = vst.msk [vmem:[%s1 + $0x10] sm:$0xff] %vm1221, 0.0
    %1225 = vst.msk [vmem:[%s1 + $0x18] sm:$0xff] %vm1221, 0.0
    %1226 = vst.msk [vmem:[%s1 + $0x20] sm:$0xff] %vm1221, 0.0
    %1227 = vst.msk [vmem:[%s1 + $0x28] sm:$0xff] %vm1221, 0.0
    %1228 = vst.msk [vmem:[%s1 + $0x30] sm:$0xff] %vm1221, 0.0
    %1229 = vst.msk [vmem:[%s1 + $0x38] sm:$0xff] %vm1221, 0.0
    %1230 = vst.msk [vmem:[%s1 + $0x40] sm:$0xff] %vm1221, 0.0
    %1231 = vst.msk [vmem:[%s1 + $0x48] sm:$0xff] %vm1221, 0.0
    %1232 = vst.msk [vmem:[%s1 + $0x50] sm:$0xff] %vm1221, 0.0
    %1233 = vst.msk [vmem:[%s1 + $0x58] sm:$0xff] %vm1221, 0.0
    %1234 = vst.msk [vmem:[%s1 + $0x60] sm:$0xff] %vm1221, 0.0
    %1235 = vst.msk [vmem:[%s1 + $0x68] sm:$0xff] %vm1221, 0.0
    %1236 = vst.msk [vmem:[%s1 + $0x70] sm:$0xff] %vm1221, 0.0
    %1237 = vst.msk [vmem:[%s1 + $0x78] sm:$0xff] %vm1221, 0.0
    // Predicated region
    $region10: #{up_forward.1} parent=1 // pred_check
      _
    $region11: #{up_forward.1} parent=1 // pred_check_branch
      %1239 = sbr.rel (0) target = $region13
    $region12: #{up_forward.1} parent=1 // pred_region
      _
    $region13: #{up_forward.1} parent=1 // pred_fallthru
      _
    // Predicated region
    $region14: #{up_forward.1} parent=1 // pred_check
      _
    $region15: #{up_forward.1} parent=1 // pred_check_branch
      %1241 = sbr.rel (0) target = $region17
    $region16: #{up_forward.1} parent=1 // pred_region
      _
    $region17: #{up_forward.1} parent=1 // pred_fallthru
      _
    %1242 = vsyncpa [#allocation3], 1

</llo_original>
